<compile_context>
chip_gen: v7x
topology: tpu7x:2x2x1
jax: 0.10.0
libtpu: 0.0.40
codegen_flags: <defaults>
</compile_context>

<pallas_src>
import math

import jax
import jax.numpy as jnp
from jax.experimental import pallas as pl
from jax.experimental.pallas import tpu as pltpu


def _round_up(n, m):
    return ((n + m - 1) // m) * m


def make_mlp_kernel(num_layers, bias_offsets, bias_sizes, compute_dtype):
    """Fused-MLP kernel body.

    Ref order: (x_ref, w0, ..., w{L-1}, bias_cat_ref, out_ref)
      x_ref:        (tb, input_dim)        VMEM tile (pipelined), compute_dtype
      w_i:          (K_i, out_pad_i)       resident VMEM, compute_dtype
      bias_cat_ref: (1, sum(out_pad_i))    resident VMEM, f32
      out_ref:      (tb, out_pad_last)     VMEM tile (pipelined), f32
    """
    compute_dtype = jnp.dtype(compute_dtype)

    def kernel(*refs):
        x_ref = refs[0]
        w_refs = refs[1:1 + num_layers]
        b_ref = refs[1 + num_layers]
        out_ref = refs[-1]

        h = x_ref[...]                          # compute_dtype (tb, K0)
        for i in range(num_layers):
            w = w_refs[i][...]                  # compute_dtype (K_i, N_i)
            off, size = bias_offsets[i], bias_sizes[i]
            b = b_ref[:, off:off + size]        # f32 (1, N_i), static 128-aligned slice
            h = jnp.dot(h, w, preferred_element_type=jnp.float32) + b
            if i < num_layers - 1:              # ReLU on all but the last layer
                h = jnp.maximum(h, 0.0)
                h = h.astype(compute_dtype)     # lhs for the next MXU pass
        out_ref[...] = h.astype(out_ref.dtype)

    return kernel


class RegularNetPallas:
    """JAX/Pallas equivalent of the PyTorch RegularNet module."""

    def __init__(self, input_dim, output_dim, layers, key,
                 compute_dtype=jnp.bfloat16):
        if output_dim == 0:
            output_dim = 1
            self.squeeze_out = True
        else:
            self.squeeze_out = False
        self.input_dim = input_dim
        self.output_dim = output_dim
        self.compute_dtype = jnp.dtype(compute_dtype)

        self.dims = (input_dim,) + tuple(layers) + (output_dim,)
        # Pad hidden/output feature dims to multiples of 128 (lane width).
        # The *input* dim stays logical so x needs no wrapper-side padding.
        self.dims_pad = (input_dim,) + tuple(_round_up(d, 128)
                                             for d in self.dims[1:])
        self.num_layers = len(self.dims) - 1

        # Deterministic init mimicking torch.nn.Linear defaults:
        # uniform(-1/sqrt(fan_in), 1/sqrt(fan_in)) for weight and bias.
        self.weights = []      # logical (in_d, out_d) f32, for the reference
        self.biases = []       # logical (out_d,) f32
        self.weights_p = []    # zero-padded (K_i, out_pad_i), compute_dtype
        bias_pads = []
        for li in range(self.num_layers):
            in_d, out_d = self.dims[li], self.dims[li + 1]
            in_p, out_p = self.dims_pad[li], self.dims_pad[li + 1]
            key, kw, kb = jax.random.split(key, 3)
            bound = 1.0 / math.sqrt(in_d)
            w = jax.random.uniform(kw, (in_d, out_d), jnp.float32, -bound, bound)
            b = jax.random.uniform(kb, (out_d,), jnp.float32, -bound, bound)
            self.weights.append(w)
            self.biases.append(b)
            w_p = jnp.zeros((in_p, out_p), jnp.float32).at[:in_d, :out_d].set(w)
            b_p = jnp.zeros((out_p,), jnp.float32).at[:out_d].set(b)
            # Pre-cast once at init (loop-invariant across the grid).
            self.weights_p.append(w_p.astype(self.compute_dtype))
            bias_pads.append(b_p)

        # Single concatenated bias block (one resident f32 VMEM array).
        self.bias_cat = jnp.concatenate(bias_pads)[None, :]   # (1, total_out_pad)
        self.bias_sizes = tuple(self.dims_pad[1:])
        offs, off = [], 0
        for s in self.bias_sizes:
            offs.append(off)
            off += s
        self.bias_offsets = tuple(offs)

    def __call__(self, x, tile_b=512, min_grid_steps=2):
        batch, in_dim = x.shape
        assert in_dim == self.input_dim, (in_dim, self.input_dim)
        out_pad = self.dims_pad[-1]
        itemsize_c = self.compute_dtype.itemsize

        # Batch tile: multiple of 8 sublanes, at most tile_b, and (when the
        # batch allows it) small enough that grid_b >= min_grid_steps so the
        # "parallel" batch axis keeps both v7x TensorCores busy and the input
        # DMA pipeline has something to overlap.
        tb = _round_up(min(int(tile_b), max(batch, 8)), 8)
        if min_grid_steps > 1 and batch > 8:
            tb = min(tb, _round_up(pl.cdiv(batch, min_grid_steps), 8))
        tb = max(tb, 8)
        grid_b = pl.cdiv(batch, tb)          # ragged last tile masked by Pallas

        # Pre-cast x once (halves the per-tile input DMA for bf16 compute).
        x_c = x if x.dtype == self.compute_dtype else x.astype(self.compute_dtype)

        kernel = make_mlp_kernel(self.num_layers, self.bias_offsets,
                                 self.bias_sizes, self.compute_dtype)

        # Parameters: untiled, resident in VMEM for the whole grid (no
        # per-step double buffering of weights/biases).
        param_specs = [pl.BlockSpec(memory_space=pltpu.MemorySpace.VMEM)
                       for _ in range(self.num_layers + 1)]

        # VMEM budget: resident params + double-buffered in/out tiles + live
        # f32 intermediates.  Physical cap queried per-generation.
        param_bytes = (sum(int(w.size) * itemsize_c for w in self.weights_p)
                       + int(self.bias_cat.size) * 4)
        io_bytes = 2 * tb * in_dim * itemsize_c + 2 * tb * out_pad * 4
        act_bytes = 4 * tb * max(self.dims_pad) * 4
        needed = param_bytes + io_bytes + act_bytes
        try:
            vmem_cap = int(pltpu.get_tpu_info().vmem_capacity_bytes)
        except Exception:
            vmem_cap = 64 * 1024 * 1024      # conservative (v7x per-core)
        headroom = 16 * 1024 * 1024          # compiler temporaries
        budget = max(vmem_cap - headroom, 32 * 1024 * 1024)
        if needed > budget:
            # TODO(synk): per-layer K/N tiling fallback (weights are duplicated
            # per TensorCore under the "parallel" batch axis on v7x).
            raise NotImplementedError(
                f"Resident-weight MLP needs ~{needed / 2**20:.1f} MiB VMEM > "
                f"budget {budget / 2**20:.1f} MiB; tiled fallback not implemented.")
        vmem_limit = int(min(budget, max(2 * needed, 8 * 1024 * 1024)))

        flops = 2 * batch * sum(int(w.shape[0]) * int(w.shape[1])
                                for w in self.weights_p)
        bytes_accessed = (batch * in_dim * itemsize_c + param_bytes
                          + batch * out_pad * 4)

        out_p = pl.pallas_call(
            kernel,
            out_shape=jax.ShapeDtypeStruct((batch, out_pad), jnp.float32),
            grid_spec=pltpu.PrefetchScalarGridSpec(
                num_scalar_prefetch=0,
                grid=(grid_b,),
                # Default double buffering is enough once the tile is large;
                # add pipeline_mode=pl.Buffered(3) only if profiling shows
                # exposed input-DMA latency.
                in_specs=[pl.BlockSpec((tb, in_dim), lambda i: (i, 0))]
                + param_specs,
                out_specs=pl.BlockSpec((tb, out_pad), lambda i: (i, 0)),
            ),
            compiler_params=pltpu.CompilerParams(
                dimension_semantics=("parallel",),
                vmem_limit_bytes=vmem_limit,
            ),
            cost_estimate=pl.CostEstimate(
                flops=flops, transcendentals=0, bytes_accessed=bytes_accessed),
        )(x_c, *self.weights_p, self.bias_cat)

        out = out_p[:, :self.output_dim]
        if self.squeeze_out:
            out = out[..., 0]
        return out

    # Pure-JAX f32 reference for verification (uses the unpadded parameters).
    def reference(self, x):
        h = x
        for i, (w, b) in enumerate(zip(self.weights, self.biases)):
            h = jnp.dot(h, w, precision=jax.lax.Precision.HIGHEST) + b
            if i < self.num_layers - 1:
                h = jnp.maximum(h, 0.0)
        if self.squeeze_out:
            h = h[..., 0]
        return h


if __name__ == "__main__":
    key = jax.random.PRNGKey(0)
    key, kx1, kp1, kx2, kp2 = jax.random.split(key, 5)

    # Config 1: squeeze_out path (output_dim=0 -> internal 1), default bf16
    # compute (f32 accumulation), ragged batch (exercises cdiv + masked last
    # tile) and >= 2 grid steps (exercises pipelining / v7x parallel batch).
    net1 = RegularNetPallas(32, 0, (64, 32), kp1)
    x1 = jax.random.normal(kx1, (200, 32), jnp.float32)
    out1 = jax.block_until_ready(net1(x1))
    ref1 = net1.reference(x1)
    assert out1.shape == ref1.shape, (out1.shape, ref1.shape)
    assert jnp.allclose(out1, ref1, atol=3e-2, rtol=3e-2), "config1 mismatch"

    # Config 2: plain multi-output head, tiny batch (single grid step),
    # f32 compute path (tight tolerance).
    net2 = RegularNetPallas(32, 16, (64,), kp2, compute_dtype=jnp.float32)
    x2 = jax.random.normal(kx2, (8, 32), jnp.float32)
    out2 = jax.block_until_ready(net2(x2))
    ref2 = net2.reference(x2)
    assert out2.shape == ref2.shape, (out2.shape, ref2.shape)
    assert jnp.allclose(out2, ref2, atol=2e-3, rtol=2e-3), "config2 mismatch"

    print("KERNEL_OK")
</pallas_src>

<mosaic_0001>
module attributes {stable_mosaic.version = 11 : i64} {
  func.func @kernel(%arg0: i32, %arg1: memref<104x32xbf16, #tpu.memory_space<vmem>>, %arg2: memref<32x128xbf16, #tpu.memory_space<vmem>>, %arg3: memref<128x128xbf16, #tpu.memory_space<vmem>>, %arg4: memref<128x128xbf16, #tpu.memory_space<vmem>>, %arg5: memref<1x384xf32, #tpu.memory_space<vmem>>, %arg6: memref<104x128xf32, #tpu.memory_space<vmem>>) attributes {dimension_semantics = [#tpu.dimension_semantics<parallel>], iteration_bounds = array<i64: 2>, scalar_prefetch = 0 : i64, scratch_operands = 0 : i64, tpu.core_type = #tpu.core_type<tc>, window_params = [{transform_indices = @transform_0, window_bounds = array<i64: 104, 32>}, {pipeline_mode = #tpu.pipeline_mode<synchronous>, transform_indices = @transform_1, window_bounds = array<i64: 32, 128>}, {pipeline_mode = #tpu.pipeline_mode<synchronous>, transform_indices = @transform_2, window_bounds = array<i64: 128, 128>}, {pipeline_mode = #tpu.pipeline_mode<synchronous>, transform_indices = @transform_3, window_bounds = array<i64: 128, 128>}, {pipeline_mode = #tpu.pipeline_mode<synchronous>, transform_indices = @transform_4, window_bounds = array<i64: 1, 384>}, {transform_indices = @transform_5, window_bounds = array<i64: 104, 128>}]} {
    %c0 = arith.constant 0 : index
    %c0_0 = arith.constant 0 : index
    %0 = vector.load %arg1[%c0, %c0_0] : memref<104x32xbf16, #tpu.memory_space<vmem>>, vector<104x32xbf16>
    %c0_1 = arith.constant 0 : index
    %c0_2 = arith.constant 0 : index
    %1 = vector.load %arg2[%c0_1, %c0_2] : memref<32x128xbf16, #tpu.memory_space<vmem>>, vector<32x128xbf16>
    %c0_3 = arith.constant 0 : index
    %c0_4 = arith.constant 0 : index
    %2 = vector.load %arg5[%c0_3, %c0_4] : memref<1x384xf32, #tpu.memory_space<vmem>>, vector<1x128xf32>
    %cst = arith.constant dense<0.000000e+00> : vector<104x128xf32>
    %3 = tpu.matmul %0, %1, %cst {dimension_numbers = #tpu.dot_dimension_numbers<[1], [0], [0], [1], [0, 0, 1, 1], [], []>} : vector<104x32xbf16>, vector<32x128xbf16>, vector<104x128xf32> -> vector<104x128xf32>
    %4 = vector.broadcast %2 : vector<1x128xf32> to vector<104x128xf32>
    %5 = arith.addf %3, %4 : vector<104x128xf32>
    %cst_5 = arith.constant 0.000000e+00 : f32
    %6 = vector.broadcast %cst_5 : f32 to vector<104x128xf32>
    %7 = arith.maximumf %5, %6 : vector<104x128xf32>
    %8 = arith.truncf %7 : vector<104x128xf32> to vector<104x128xbf16>
    %c0_6 = arith.constant 0 : index
    %c0_7 = arith.constant 0 : index
    %9 = vector.load %arg3[%c0_6, %c0_7] : memref<128x128xbf16, #tpu.memory_space<vmem>>, vector<128x128xbf16>
    %c0_8 = arith.constant 0 : index
    %c128 = arith.constant 128 : index
    %10 = vector.load %arg5[%c0_8, %c128] : memref<1x384xf32, #tpu.memory_space<vmem>>, vector<1x128xf32>
    %cst_9 = arith.constant dense<0.000000e+00> : vector<104x128xf32>
    %11 = tpu.matmul %8, %9, %cst_9 {dimension_numbers = #tpu.dot_dimension_numbers<[1], [0], [0], [1], [0, 0, 1, 1], [], []>} : vector<104x128xbf16>, vector<128x128xbf16>, vector<104x128xf32> -> vector<104x128xf32>
    %12 = vector.broadcast %10 : vector<1x128xf32> to vector<104x128xf32>
    %13 = arith.addf %11, %12 : vector<104x128xf32>
    %cst_10 = arith.constant 0.000000e+00 : f32
    %14 = vector.broadcast %cst_10 : f32 to vector<104x128xf32>
    %15 = arith.maximumf %13, %14 : vector<104x128xf32>
    %16 = arith.truncf %15 : vector<104x128xf32> to vector<104x128xbf16>
    %c0_11 = arith.constant 0 : index
    %c0_12 = arith.constant 0 : index
    %17 = vector.load %arg4[%c0_11, %c0_12] : memref<128x128xbf16, #tpu.memory_space<vmem>>, vector<128x128xbf16>
    %c0_13 = arith.constant 0 : index
    %c256 = arith.constant 256 : index
    %18 = vector.load %arg5[%c0_13, %c256] : memref<1x384xf32, #tpu.memory_space<vmem>>, vector<1x128xf32>
    %cst_14 = arith.constant dense<0.000000e+00> : vector<104x128xf32>
    %19 = tpu.matmul %16, %17, %cst_14 {dimension_numbers = #tpu.dot_dimension_numbers<[1], [0], [0], [1], [0, 0, 1, 1], [], []>} : vector<104x128xbf16>, vector<128x128xbf16>, vector<104x128xf32> -> vector<104x128xf32>
    %20 = vector.broadcast %18 : vector<1x128xf32> to vector<104x128xf32>
    %21 = arith.addf %19, %20 : vector<104x128xf32>
    %c0_15 = arith.constant 0 : index
    %c0_16 = arith.constant 0 : index
    %22 = vector.load %arg6[%c0_15, %c0_16] : memref<104x128xf32, #tpu.memory_space<vmem>>, vector<104x128xf32>
    tpu.vector_store %arg6[%c0_15, %c0_16], %21 {strides = array<i32>} : memref<104x128xf32, #tpu.memory_space<vmem>>, vector<104x128xf32>,
    return
  }
  func.func @transform_0(%arg0: i32) -> (i32, i32) {
    %c0_i32 = arith.constant 0 : i32
    %c0_i32_0 = arith.constant 0 : i32
    return %arg0, %c0_i32 : i32, i32
  }
  func.func @transform_1(%arg0: i32) -> (i32, i32) {
    %c0_i32 = arith.constant 0 : i32
    %c0_i32_0 = arith.constant 0 : i32
    %c0_i32_1 = arith.constant 0 : i32
    return %c0_i32, %c0_i32_0 : i32, i32
  }
  func.func @transform_2(%arg0: i32) -> (i32, i32) {
    %c0_i32 = arith.constant 0 : i32
    %c0_i32_0 = arith.constant 0 : i32
    %c0_i32_1 = arith.constant 0 : i32
    return %c0_i32, %c0_i32_0 : i32, i32
  }
  func.func @transform_3(%arg0: i32) -> (i32, i32) {
    %c0_i32 = arith.constant 0 : i32
    %c0_i32_0 = arith.constant 0 : i32
    %c0_i32_1 = arith.constant 0 : i32
    return %c0_i32, %c0_i32_0 : i32, i32
  }
  func.func @transform_4(%arg0: i32) -> (i32, i32) {
    %c0_i32 = arith.constant 0 : i32
    %c0_i32_0 = arith.constant 0 : i32
    %c0_i32_1 = arith.constant 0 : i32
    return %c0_i32, %c0_i32_0 : i32, i32
  }
  func.func @transform_5(%arg0: i32) -> (i32, i32) {
    %c0_i32 = arith.constant 0 : i32
    %c0_i32_0 = arith.constant 0 : i32
    return %arg0, %c0_i32 : i32, i32
  }
}

</mosaic_0001>

<llo_original>
// kernel: tpu_custom_call.1
$region0: #{tpu_custom_call.1}
  #allocation0 [shape = 'u32[]', space=smem, size = 0x4, offset = 0x4, fixed_abs, tag = 'smem constant byte address 0x4 - core index']
  #allocation1 [shape = 'u32[144,128]{1,0:T(1,128)}', space=vmem, size = 0x12000, scoped, tag = 'internal scratch']
  %s0 = inlined_call_operand.vmem [shape: bf16[200,32], index: 0, kind: input, shape index: {}]
  %s1 = inlined_call_operand.hbm [shape: bf16[32,128], index: 1, kind: input, shape index: {}]
  %s2 = inlined_call_operand.vmem [shape: bf16[128,128], index: 2, kind: input, shape index: {}]
  %s3 = inlined_call_operand.vmem [shape: bf16[128,128], index: 3, kind: input, shape index: {}]
  %s4 = inlined_call_operand.vmem [shape: f32[1,384], index: 4, kind: input, shape index: {}]
  %s5 = inlined_call_operand.hbm [shape: f32[200,128], index: 5, kind: output, shape index: {}]
  %s6 = sld [smem:[#allocation0]]
  $region57: #{tpu_custom_call.1} parent=0
    _
  %s8 = ssub.s32 1, %s6
  %s9 = scalar_select 0, %s8, %s6
  $region1: #{tpu_custom_call.1} parent=0
    #allocation2 [shape = 'u8[8192]{0}', space=vmem, size = 0x2000, scoped, tag = 'input window, operand 1, single buffered']
    #allocation3 [shape = 's32[2]{0}', space=sflag, size = 0x8, scoped, tag = 'scoped memory for tpu_custom_call.1']
    #allocation4 [shape = 's32[2]{0}', space=sflag, size = 0x8, scoped, tag = 'scoped memory for tpu_custom_call.1']
    #allocation5 [shape = 'u8[106496]{0}', space=vmem, size = 0x1a000, scoped, tag = 'output window, operand 0']
    %10 = vsyncpa [#allocation3], 0
    %11 = vsyncpa [#allocation4], 0
    %s12 = scalar_lea.sflag [#allocation4], 1
    %13 = vsyncpa %s12, 0
    loop: start=0, step=1, limit=4
    $region2: #{tpu_custom_call.1} parent=1 // loop_pre_header
      _
    $region3: #{tpu_custom_call.1} parent=1 // loop_header
      %s15 = sphi 0, %s19
      %p16 = scmp.ge.s32.totalorder %s15, 4
      %s25 = sphi 0, %s27
      %s28 = sphi 0, %s25
      %s29 = sphi 0, %s28
      %s45 = sphi 0, %s29
      %s49 = sphi 0, %s49
      %s51 = sphi 0, %s49
      %s52 = sphi 0, %s51
      %s66 = sphi 0, %s52
      %s70 = sphi 0, %s70
      %s72 = sphi 0, %s70
      %s73 = sphi 0, %s72
      %s87 = sphi 0, %s73
      %s91 = sphi 0, %s91
      %s93 = sphi 0, %s91
      %s94 = sphi 0, %s93
      %s108 = sphi 0, %s94
      %s112 = sphi 0, %s112
      %s114 = sphi 0, %s112
      %s115 = sphi 0, %s114
      %s129 = sphi 0, %s115
      %s135 = sphi 0, %s137
      %s138 = sphi 0, %s135
      %s139 = sphi 0, %s138
      %s155 = sphi 0, %s139
    $region4: #{tpu_custom_call.1} parent=1 // loop_header_branch
      %18 = sbr.rel (%p16) target = $region8
    $region5: #{tpu_custom_call.1} parent=1 // loop_body
      %s20 = ssub.s32 %s15, 1
      %s21 = ssub.s32 %s15, 2
      %s22 = sadd.s32 %s15, 1
      %s23 = ssub.s32 %s15, %s22
      %p24 = scmp.eq.s32.totalorder %s23, 0
      %s26 = sadd.s32 %s25, 1
      %s27 = scalar_select %p24, %s25, %s26
      %p30 = pneg %p24
      %p31 = scmp.eq.s32.totalorder %s15, 1
      %p32 = por %p30, %p31
      %p33 = scmp.ne.s32.totalorder %s25, %s28
      %p34 = scmp.eq.s32.totalorder %s15, 0
      %p35 = por %p33, %p34
      %p36 = scmp.ne.s32.totalorder %s25, %s28
      %p37 = scmp.eq.s32.totalorder %s20, 1
      %p38 = por %p36, %p37
      %p39 = scmp.ne.s32.totalorder %s28, %s29
      %p40 = scmp.eq.s32.totalorder %s20, 0
      %p41 = por %p39, %p40
      %p42 = scmp.ne.s32.totalorder %s28, %s29
      %p43 = scmp.eq.s32.totalorder %s21, 1
      %p44 = por %p42, %p43
      %p46 = scmp.ne.s32.totalorder %s29, %s45
      %p47 = scmp.eq.s32.totalorder %s21, 0
      %p48 = por %p46, %p47
      %s50 = sadd.s32 %s49, 1
      %p53 = scmp.eq.s32.totalorder %s15, 1
      %p54 = scmp.ne.s32.totalorder %s49, %s51
      %p55 = scmp.eq.s32.totalorder %s15, 0
      %p56 = por %p54, %p55
      %p57 = scmp.ne.s32.totalorder %s49, %s51
      %p58 = scmp.eq.s32.totalorder %s20, 1
      %p59 = por %p57, %p58
      %p60 = scmp.ne.s32.totalorder %s51, %s52
      %p61 = scmp.eq.s32.totalorder %s20, 0
      %p62 = por %p60, %p61
      %p63 = scmp.ne.s32.totalorder %s51, %s52
      %p64 = scmp.eq.s32.totalorder %s21, 1
      %p65 = por %p63, %p64
      %p67 = scmp.ne.s32.totalorder %s52, %s66
      %p68 = scmp.eq.s32.totalorder %s21, 0
      %p69 = por %p67, %p68
      %s71 = sadd.s32 %s70, 1
      %p74 = scmp.eq.s32.totalorder %s15, 1
      %p75 = scmp.ne.s32.totalorder %s70, %s72
      %p76 = scmp.eq.s32.totalorder %s15, 0
      %p77 = por %p75, %p76
      %p78 = scmp.ne.s32.totalorder %s70, %s72
      %p79 = scmp.eq.s32.totalorder %s20, 1
      %p80 = por %p78, %p79
      %p81 = scmp.ne.s32.totalorder %s72, %s73
      %p82 = scmp.eq.s32.totalorder %s20, 0
      %p83 = por %p81, %p82
      %p84 = scmp.ne.s32.totalorder %s72, %s73
      %p85 = scmp.eq.s32.totalorder %s21, 1
      %p86 = por %p84, %p85
      %p88 = scmp.ne.s32.totalorder %s73, %s87
      %p89 = scmp.eq.s32.totalorder %s21, 0
      %p90 = por %p88, %p89
      %s92 = sadd.s32 %s91, 1
      %p95 = scmp.eq.s32.totalorder %s15, 1
      %p96 = scmp.ne.s32.totalorder %s91, %s93
      %p97 = scmp.eq.s32.totalorder %s15, 0
      %p98 = por %p96, %p97
      %p99 = scmp.ne.s32.totalorder %s91, %s93
      %p100 = scmp.eq.s32.totalorder %s20, 1
      %p101 = por %p99, %p100
      %p102 = scmp.ne.s32.totalorder %s93, %s94
      %p103 = scmp.eq.s32.totalorder %s20, 0
      %p104 = por %p102, %p103
      %p105 = scmp.ne.s32.totalorder %s93, %s94
      %p106 = scmp.eq.s32.totalorder %s21, 1
      %p107 = por %p105, %p106
      %p109 = scmp.ne.s32.totalorder %s94, %s108
      %p110 = scmp.eq.s32.totalorder %s21, 0
      %p111 = por %p109, %p110
      %s113 = sadd.s32 %s112, 1
      %p116 = scmp.eq.s32.totalorder %s15, 1
      %p117 = scmp.ne.s32.totalorder %s112, %s114
      %p118 = scmp.eq.s32.totalorder %s15, 0
      %p119 = por %p117, %p118
      %p120 = scmp.ne.s32.totalorder %s112, %s114
      %p121 = scmp.eq.s32.totalorder %s20, 1
      %p122 = por %p120, %p121
      %p123 = scmp.ne.s32.totalorder %s114, %s115
      %p124 = scmp.eq.s32.totalorder %s20, 0
      %p125 = por %p123, %p124
      %p126 = scmp.ne.s32.totalorder %s114, %s115
      %p127 = scmp.eq.s32.totalorder %s21, 1
      %p128 = por %p126, %p127
      %p130 = scmp.ne.s32.totalorder %s115, %s129
      %p131 = scmp.eq.s32.totalorder %s21, 0
      %p132 = por %p130, %p131
      %s133 = ssub.s32 %s15, %s22
      %p134 = scmp.eq.s32.totalorder %s133, 0
      %s136 = sadd.s32 %s135, 1
      %s137 = scalar_select %p134, %s135, %s136
      %p140 = pneg %p134
      %p141 = scmp.eq.s32.totalorder %s15, 1
      %p142 = por %p140, %p141
      %p143 = scmp.ne.s32.totalorder %s135, %s138
      %p144 = scmp.eq.s32.totalorder %s15, 0
      %p145 = por %p143, %p144
      %p146 = scmp.ne.s32.totalorder %s135, %s138
      %p147 = scmp.eq.s32.totalorder %s20, 1
      %p148 = por %p146, %p147
      %p149 = scmp.ne.s32.totalorder %s138, %s139
      %p150 = scmp.eq.s32.totalorder %s20, 0
      %p151 = por %p149, %p150
      %p152 = scmp.ne.s32.totalorder %s138, %s139
      %p153 = scmp.eq.s32.totalorder %s21, 1
      %p154 = por %p152, %p153
      %p156 = scmp.ne.s32.totalorder %s139, %s155
      %p157 = scmp.eq.s32.totalorder %s21, 0
      %p158 = por %p156, %p157
      %p159 = scmp.le.s32.totalorder 1, %s15
      %p160 = scmp.lt.s32.totalorder %s15, 3
      %p161 = pnand %p159, %p160
      %p162 = pneg %p161
      // Predicated region
      $region9: #{tpu_custom_call.1} parent=5 // pred_check
        _
      $region10: #{tpu_custom_call.1} parent=5 // pred_check_branch
        %164 = sbr.rel (%p161) target = $region12
      $region11: #{tpu_custom_call.1} parent=5 // pred_region
        %s165 = ssub.s32 %s15, 1
        // Predicated region
        $region13: #{tpu_custom_call.1} parent=11 // pred_check
          %p166 = pneg %p62
        $region14: #{tpu_custom_call.1} parent=11 // pred_check_branch
          %168 = sbr.rel (%p166) target = $region16
        $region15: #{tpu_custom_call.1} parent=11 // pred_region
          %s170 = ssub.s32 256, 256
          %171 = vsyncadd [#allocation3], %s170
          %s172 = sshll.u32 [#allocation2], 4
          %s173 = int_to_ptr.vmem [resolvable:$true] %s172
          %178 = dma.hbm_to_vmem [thread:$0]  %s1, 256, %s173, [#allocation3], 64, 64, 4
        $region16: #{tpu_custom_call.1} parent=11 // pred_fallthru
          _
        // Predicated region
        $region17: #{tpu_custom_call.1} parent=11 // pred_check
          %p179 = pneg %p83
        $region18: #{tpu_custom_call.1} parent=11 // pred_check_branch
          %181 = sbr.rel (%p179) target = $region20
        $region19: #{tpu_custom_call.1} parent=11 // pred_region
          _
        $region20: #{tpu_custom_call.1} parent=11 // pred_fallthru
          _
        // Predicated region
        $region21: #{tpu_custom_call.1} parent=11 // pred_check
          %p182 = pneg %p104
        $region22: #{tpu_custom_call.1} parent=11 // pred_check_branch
          %184 = sbr.rel (%p182) target = $region24
        $region23: #{tpu_custom_call.1} parent=11 // pred_region
          _
        $region24: #{tpu_custom_call.1} parent=11 // pred_fallthru
          _
        // Predicated region
        $region25: #{tpu_custom_call.1} parent=11 // pred_check
          %p185 = pneg %p125
        $region26: #{tpu_custom_call.1} parent=11 // pred_check_branch
          %187 = sbr.rel (%p185) target = $region28
        $region27: #{tpu_custom_call.1} parent=11 // pred_region
          _
        $region28: #{tpu_custom_call.1} parent=11 // pred_fallthru
          _
      $region12: #{tpu_custom_call.1} parent=5 // pred_fallthru
        _
      %p188 = scmp.lt.s32.totalorder %s15, 2
      // Predicated region
      $region29: #{tpu_custom_call.1} parent=5 // pred_check
        %p189 = pneg %p188
      $region30: #{tpu_custom_call.1} parent=5 // pred_check_branch
        %191 = sbr.rel (%p189) target = $region32
      $region31: #{tpu_custom_call.1} parent=5 // pred_region
        // Predicated region
        $region33: #{tpu_custom_call.1} parent=31 // pred_check
          %p192 = pneg %p35
        $region34: #{tpu_custom_call.1} parent=31 // pred_check_branch
          %194 = sbr.rel (%p192) target = $region36
        $region35: #{tpu_custom_call.1} parent=31 // pred_region
          %s195 = smul.u32 13, %s15
          %s196 = ssub.s32 25, %s195
          %p197 = scmp.lt.s32.totalorder %s196, 13
          %s198 = scalar_select %p197, %s196, 13
          %s199 = smul.u32 64, %s198
          %p200 = scmp.lt.s32.totalorder %s195, 24
          %s201 = scalar_select %p200, %s195, 24
          %s202 = smul.addr %s201, 4
          %s203 = scalar_lea.vmem %s0, %s202
          %s204 = smul.u32 13, %s15
          %s205 = ssub.s32 25, %s204
          %p206 = scmp.lt.s32.totalorder %s205, 13
          %s207 = scalar_select %p206, %s205, 13
          %s208 = smul.u32 64, %s207
        $region36: #{tpu_custom_call.1} parent=31 // pred_fallthru
          _
      $region32: #{tpu_custom_call.1} parent=5 // pred_fallthru
        _
      %p209 = scmp.le.s32.totalorder 1, %s15
      %p210 = scmp.lt.s32.totalorder %s15, 3
      %p211 = pnand %p209, %p210
      %p212 = pneg %p211
      // Predicated region
      $region37: #{tpu_custom_call.1} parent=5 // pred_check
        _
      $region38: #{tpu_custom_call.1} parent=5 // pred_check_branch
        %214 = sbr.rel (%p211) target = $region40
      $region39: #{tpu_custom_call.1} parent=5 // pred_region
        %s215 = ssub.s32 %s15, 1
        // Predicated region
        $region41: #{tpu_custom_call.1} parent=39 // pred_check
          %p216 = pneg %p62
        $region42: #{tpu_custom_call.1} parent=39 // pred_check_branch
          %218 = sbr.rel (%p216) target = $region44
        $region43: #{tpu_custom_call.1} parent=39 // pred_region
          %219 = dma.done [#allocation3], 256
        $region44: #{tpu_custom_call.1} parent=39 // pred_fallthru
          _
        %s220 = smul.u32 13, %s20
        %s221 = ssub.s32 25, %s220
        %p222 = scmp.lt.s32.totalorder %s221, 13
        %s223 = scalar_select %p222, %s221, 13
        %s224 = smul.u32 64, %s223
        %p225 = scmp.lt.s32.totalorder %s220, 24
        %s226 = scalar_select %p225, %s220, 24
        %s227 = smul.addr %s226, 4
        %s228 = scalar_lea.vmem %s0, %s227
        %p229 = pneg %p41
        %p230 = pneg %p38
        %p231 = pneg %p62
        %p232 = pneg %p59
        %p233 = pneg %p83
        %p234 = pneg %p80
        %p235 = pneg %p104
        %p236 = pneg %p101
        %p237 = pneg %p125
        %p238 = pneg %p122
        %p239 = pneg %p151
        %p240 = pneg %p148
        %s241 = sand.u32 %s138, 1
        %s242 = scalar_lea.sflag [#allocation4], %s241
        %s243 = sand.u32 %s138, 1
        %s244 = smul.addr %s243, 104
        %s245 = scalar_lea.vmem [#allocation5], %s244
        %s246 = smul.u32 13, %s20
        %s247 = ssub.s32 25, %s246
        %p248 = scmp.lt.s32.totalorder %s247, 13
        %s249 = scalar_select %p248, %s247, 13
        %s250 = smul.u32 64, %s249
        %p251 = scmp.lt.s32.totalorder %s246, 24
        %s252 = scalar_select %p251, %s246, 24
        %s253 = smul.addr %s252, 4
        %s254 = scalar_lea.vmem %s0, %s253
        %s255 = smul.u32 13, %s20
        %s256 = ssub.s32 25, %s255
        %p257 = scmp.lt.s32.totalorder %s256, 13
        %s258 = scalar_select %p257, %s256, 13
        %s259 = smul.u32 64, %s258
        %s260 = smul.u32 13, %s20
        %s261 = ssub.s32 25, %s260
        %p262 = scmp.lt.s32.totalorder %s261, 13
        %s263 = scalar_select %p262, %s261, 13
        %s264 = smul.u32 128, %s263
        %v266 = vld [vmem:[%s254] sm:$0xf]
        %v267 = vld [vmem:[%s254 + $0x4] sm:$0xf]
        %v268 = vld [vmem:[%s254 + $0x8] sm:$0xf]
        %v269 = vld [vmem:[%s254 + $0xc] sm:$0xf]
        %v270 = vld [vmem:[%s254 + $0x10] sm:$0xf]
        %v271 = vld [vmem:[%s254 + $0x14] sm:$0xf]
        %v272 = vld [vmem:[%s254 + $0x18] sm:$0xf]
        %v273 = vld [vmem:[%s254 + $0x1c] sm:$0xf]
        %v274 = vld [vmem:[%s254 + $0x20] sm:$0xf]
        %v275 = vld [vmem:[%s254 + $0x24] sm:$0xf]
        %v276 = vld [vmem:[%s254 + $0x28] sm:$0xf]
        %v277 = vld [vmem:[%s254 + $0x2c] sm:$0xf]
        %v278 = vld [vmem:[%s254 + $0x30] sm:$0xf]
        %v279 = vld [vmem:[#allocation2] sm:$0xf]
        %v280 = vld [vmem:[#allocation2 + $0x4] sm:$0xf]
        %v281 = vld [vmem:[#allocation2 + $0x8] sm:$0xf]
        %v282 = vld [vmem:[#allocation2 + $0xc] sm:$0xf]
        %v283 = vld [vmem:[%s4] sm:$0x1]
        %v285 = vlaneseq
        %v286 = vshrl.u32 %v285, 7
        %v287 = vsub.s32 0, %v286
        %v288 = vrot.slane %v283, %v287
        %v303 = vunpack.c.l.b16 %v266
        %v304 = vunpack.c.l.b16 %v267
        %v305 = vunpack.c.l.b16 %v268
        %v306 = vunpack.c.l.b16 %v269
        %v307 = vunpack.c.l.b16 %v270
        %v308 = vunpack.c.l.b16 %v271
        %v309 = vunpack.c.l.b16 %v272
        %v310 = vunpack.c.l.b16 %v273
        %v311 = vunpack.c.l.b16 %v274
        %v312 = vunpack.c.l.b16 %v275
        %v313 = vunpack.c.l.b16 %v276
        %v314 = vunpack.c.l.b16 %v277
        %v315 = vunpack.c.l.b16 %v278
        %v316 = vpack.c.b16 %v304, %v303
        %v317 = vpack.c.b16 %v306, %v305
        %v318 = vpack.c.b16 %v308, %v307
        %v319 = vpack.c.b16 %v310, %v309
        %v320 = vpack.c.b16 %v312, %v311
        %v321 = vpack.c.b16 %v314, %v313
        %v322 = vpack.c.b16 %v315, %v315
        %v327 = vunpack.c.l.b16 %v279
        %v328 = vunpack.c.l.b16 %v280
        %v329 = vunpack.c.l.b16 %v281
        %v330 = vunpack.c.l.b16 %v282
        %v331 = vpack.c.b16 %v328, %v327
        %v332 = vpack.c.b16 %v330, %v329
        %vm335 = vcmask 261120
        %v337 = vsel %vm335, %v316, 0
        %v340 = vsel %vm335, %v317, 0
        %v343 = vsel %vm335, %v318, 0
        %v346 = vsel %vm335, %v319, 0
        %v349 = vsel %vm335, %v320, 0
        %v352 = vsel %vm335, %v321, 0
        %v355 = vsel %vm335, %v322, 0
        %357 = vmatprep.subr.bf16.mxu0 0
        %358 = vmatpush1.bf16.msra.mxu0 %v331
        %359 = vmatprep.subr.bf16.mxu0 0
        %360 = vmatpush1.bf16.msra.mxu0 %v332
        %361 = vmatprep.subr.bf16.mxu0 0
        %362 = vmatpush1.bf16.msra.mxu0 0
        %363 = vmatprep.subr.bf16.mxu0 0
        %364 = vmatpush1.bf16.msra.mxu0 0
        %365 = vmatprep.subr.bf16.mxu0 0
        %366 = vmatpush1.bf16.msra.mxu0 0
        %367 = vmatprep.subr.bf16.mxu0 0
        %368 = vmatpush1.bf16.msra.mxu0 0
        %369 = vmatprep.subr.bf16.mxu0 0
        %370 = vmatpush1.bf16.msra.mxu0 0
        %371 = vmatprep.subr.bf16.mxu0 0
        %372 = vmatpush1.bf16.msra.mxu0 0
        %373 = vmatprep.subr.bf16.mxu0 0
        %374 = vmatpush1.bf16.msra.mxu0 0
        %375 = vmatprep.subr.bf16.mxu0 0
        %376 = vmatpush1.bf16.msra.mxu0 0
        %377 = vmatprep.subr.bf16.mxu0 0
        %378 = vmatpush1.bf16.msra.mxu0 0
        %379 = vmatprep.subr.bf16.mxu0 0
        %380 = vmatpush1.bf16.msra.mxu0 0
        %381 = vmatprep.subr.bf16.mxu0 0
        %382 = vmatpush1.bf16.msra.mxu0 0
        %383 = vmatprep.subr.bf16.mxu0 0
        %384 = vmatpush1.bf16.msra.mxu0 0
        %385 = vmatprep.subr.bf16.mxu0 0
        %386 = vmatpush1.bf16.msra.mxu0 0
        %387 = vmatprep.subr.bf16.mxu0 0
        %388 = vmatpush1.bf16.msra.mxu0 0
        %389 = vmatprep.mubr.bf16.mxu0 0
        %390 = vmatmul.mubr.bf16.gmra.mrb[0].mxu0 %v337
        %v391 = vpop.f32.mrb[0].mxu0
        %v392 = vadd.f32 %v288, %v391
        %v393 = vpop.f32.mrb[0].mxu0
        %v394 = vpop.f32.mrb[0].mxu0
        %v395 = vadd.f32 %v288, %v394
        %v396 = vpop.f32.mrb[0].mxu0
        %397 = vmatprep.mubr.bf16.mxu0 0
        %398 = vmatmul.mubr.bf16.gmra.mrb[0].mxu0 %v340
        %v399 = vpop.f32.mrb[0].mxu0
        %v400 = vadd.f32 %v288, %v399
        %v401 = vpop.f32.mrb[0].mxu0
        %v402 = vpop.f32.mrb[0].mxu0
        %v403 = vadd.f32 %v288, %v402
        %v404 = vpop.f32.mrb[0].mxu0
        %405 = vmatprep.mubr.bf16.mxu0 0
        %406 = vmatmul.mubr.bf16.gmra.mrb[0].mxu0 %v343
        %v407 = vpop.f32.mrb[0].mxu0
        %v408 = vadd.f32 %v288, %v407
        %v409 = vpop.f32.mrb[0].mxu0
        %v410 = vpop.f32.mrb[0].mxu0
        %v411 = vadd.f32 %v288, %v410
        %v412 = vpop.f32.mrb[0].mxu0
        %413 = vmatprep.mubr.bf16.mxu0 0
        %414 = vmatmul.mubr.bf16.gmra.mrb[0].mxu0 %v346
        %v415 = vpop.f32.mrb[0].mxu0
        %v416 = vadd.f32 %v288, %v415
        %v417 = vpop.f32.mrb[0].mxu0
        %v418 = vpop.f32.mrb[0].mxu0
        %v419 = vadd.f32 %v288, %v418
        %v420 = vpop.f32.mrb[0].mxu0
        %421 = vmatprep.mubr.bf16.mxu0 0
        %422 = vmatmul.mubr.bf16.gmra.mrb[0].mxu0 %v349
        %v423 = vpop.f32.mrb[0].mxu0
        %v424 = vadd.f32 %v288, %v423
        %v425 = vpop.f32.mrb[0].mxu0
        %v426 = vpop.f32.mrb[0].mxu0
        %v427 = vadd.f32 %v288, %v426
        %v428 = vpop.f32.mrb[0].mxu0
        %429 = vmatprep.mubr.bf16.mxu0 0
        %430 = vmatmul.mubr.bf16.gmra.mrb[0].mxu0 %v352
        %v431 = vpop.f32.mrb[0].mxu0
        %v432 = vadd.f32 %v288, %v431
        %v433 = vpop.f32.mrb[0].mxu0
        %v434 = vpop.f32.mrb[0].mxu0
        %v435 = vadd.f32 %v288, %v434
        %v436 = vpop.f32.mrb[0].mxu0
        %437 = vmatprep.mubr.bf16.mxu0 0
        %438 = vmatmul.mubr.bf16.gmra.mrb[0].mxu0 %v355
        %v439 = vpop.f32.mrb[0].mxu0
        %v440 = vadd.f32 %v288, %v439
        %v441 = vpop.f32.mrb[0].mxu0
        %v442 = vpop.f32.mrb[0].mxu0
        %v443 = vpop.f32.mrb[0].mxu0
        %444 = vdwg.mxu0
        %v445 = vmax.f32 %v392, 0.0
        %v446 = vmax.f32 %v395, 0.0
        %v447 = vmax.f32 %v400, 0.0
        %v448 = vmax.f32 %v403, 0.0
        %v449 = vmax.f32 %v408, 0.0
        %v450 = vmax.f32 %v411, 0.0
        %v451 = vmax.f32 %v416, 0.0
        %v452 = vmax.f32 %v419, 0.0
        %v453 = vmax.f32 %v424, 0.0
        %v454 = vmax.f32 %v427, 0.0
        %v455 = vmax.f32 %v432, 0.0
        %v456 = vmax.f32 %v435, 0.0
        %v457 = vmax.f32 %v440, 0.0
        %v458 = vpack.c.bf16 %v446, %v445
        %v459 = vpack.c.bf16 %v448, %v447
        %v460 = vpack.c.bf16 %v450, %v449
        %v461 = vpack.c.bf16 %v452, %v451
        %v462 = vpack.c.bf16 %v454, %v453
        %v463 = vpack.c.bf16 %v456, %v455
        %v464 = vpack.c.bf16 %v457, %v457
        %v465 = vld [vmem:[%s2] sm:$0xf]
        %v466 = vld [vmem:[%s2 + $0x4] sm:$0xf]
        %v467 = vld [vmem:[%s2 + $0x8] sm:$0xf]
        %v468 = vld [vmem:[%s2 + $0xc] sm:$0xf]
        %v469 = vld [vmem:[%s2 + $0x10] sm:$0xf]
        %v470 = vld [vmem:[%s2 + $0x14] sm:$0xf]
        %v471 = vld [vmem:[%s2 + $0x18] sm:$0xf]
        %v472 = vld [vmem:[%s2 + $0x1c] sm:$0xf]
        %v473 = vld [vmem:[%s2 + $0x20] sm:$0xf]
        %v474 = vld [vmem:[%s2 + $0x24] sm:$0xf]
        %v475 = vld [vmem:[%s2 + $0x28] sm:$0xf]
        %v476 = vld [vmem:[%s2 + $0x2c] sm:$0xf]
        %v477 = vld [vmem:[%s2 + $0x30] sm:$0xf]
        %v478 = vld [vmem:[%s2 + $0x34] sm:$0xf]
        %v479 = vld [vmem:[%s2 + $0x38] sm:$0xf]
        %v480 = vld [vmem:[%s2 + $0x3c] sm:$0xf]
        %v481 = vld [vmem:[%s4 + $0x1] sm:$0x1]
        %v483 = vlaneseq
        %v484 = vshrl.u32 %v483, 7
        %v485 = vsub.s32 0, %v484
        %v486 = vrot.slane %v481, %v485
        %v504 = vunpack.c.l.b16 %v465
        %v505 = vunpack.c.l.b16 %v466
        %v506 = vunpack.c.l.b16 %v467
        %v507 = vunpack.c.l.b16 %v468
        %v508 = vunpack.c.l.b16 %v469
        %v509 = vunpack.c.l.b16 %v470
        %v510 = vunpack.c.l.b16 %v471
        %v511 = vunpack.c.l.b16 %v472
        %v512 = vunpack.c.l.b16 %v473
        %v513 = vunpack.c.l.b16 %v474
        %v514 = vunpack.c.l.b16 %v475
        %v515 = vunpack.c.l.b16 %v476
        %v516 = vunpack.c.l.b16 %v477
        %v517 = vunpack.c.l.b16 %v478
        %v518 = vunpack.c.l.b16 %v479
        %v519 = vunpack.c.l.b16 %v480
        %v520 = vpack.c.b16 %v505, %v504
        %v521 = vpack.c.b16 %v507, %v506
        %v522 = vpack.c.b16 %v509, %v508
        %v523 = vpack.c.b16 %v511, %v510
        %v524 = vpack.c.b16 %v513, %v512
        %v525 = vpack.c.b16 %v515, %v514
        %v526 = vpack.c.b16 %v517, %v516
        %v527 = vpack.c.b16 %v519, %v518
        %536 = vmatprep.subr.bf16.mxu0 0
        %537 = vmatpush1.bf16.msra.mxu0 %v520
        %538 = vmatprep.subr.bf16.mxu0 0
        %539 = vmatpush1.bf16.msra.mxu0 %v521
        %540 = vmatprep.subr.bf16.mxu0 0
        %541 = vmatpush1.bf16.msra.mxu0 %v522
        %542 = vmatprep.subr.bf16.mxu0 0
        %543 = vmatpush1.bf16.msra.mxu0 %v523
        %544 = vmatprep.subr.bf16.mxu0 0
        %545 = vmatpush1.bf16.msra.mxu0 %v524
        %546 = vmatprep.subr.bf16.mxu0 0
        %547 = vmatpush1.bf16.msra.mxu0 %v525
        %548 = vmatprep.subr.bf16.mxu0 0
        %549 = vmatpush1.bf16.msra.mxu0 %v526
        %550 = vmatprep.subr.bf16.mxu0 0
        %551 = vmatpush1.bf16.msra.mxu0 %v527
        %552 = vmatprep.subr.bf16.mxu0 0
        %553 = vmatpush1.bf16.msra.mxu0 0
        %554 = vmatprep.subr.bf16.mxu0 0
        %555 = vmatpush1.bf16.msra.mxu0 0
        %556 = vmatprep.subr.bf16.mxu0 0
        %557 = vmatpush1.bf16.msra.mxu0 0
        %558 = vmatprep.subr.bf16.mxu0 0
        %559 = vmatpush1.bf16.msra.mxu0 0
        %560 = vmatprep.subr.bf16.mxu0 0
        %561 = vmatpush1.bf16.msra.mxu0 0
        %562 = vmatprep.subr.bf16.mxu0 0
        %563 = vmatpush1.bf16.msra.mxu0 0
        %564 = vmatprep.subr.bf16.mxu0 0
        %565 = vmatpush1.bf16.msra.mxu0 0
        %566 = vmatprep.subr.bf16.mxu0 0
        %567 = vmatpush1.bf16.msra.mxu0 0
        %568 = vmatprep.mubr.bf16.mxu0 0
        %569 = vmatmul.mubr.bf16.gmra.mrb[0].mxu0 %v458
        %v570 = vpop.f32.mrb[0].mxu0
        %v571 = vadd.f32 %v486, %v570
        %v572 = vpop.f32.mrb[0].mxu0
        %v573 = vpop.f32.mrb[0].mxu0
        %v574 = vadd.f32 %v486, %v573
        %v575 = vpop.f32.mrb[0].mxu0
        %576 = vmatprep.mubr.bf16.mxu0 0
        %577 = vmatmul.mubr.bf16.gmra.mrb[0].mxu0 %v459
        %v578 = vpop.f32.mrb[0].mxu0
        %v579 = vadd.f32 %v486, %v578
        %v580 = vpop.f32.mrb[0].mxu0
        %v581 = vpop.f32.mrb[0].mxu0
        %v582 = vadd.f32 %v486, %v581
        %v583 = vpop.f32.mrb[0].mxu0
        %584 = vmatprep.mubr.bf16.mxu0 0
        %585 = vmatmul.mubr.bf16.gmra.mrb[0].mxu0 %v460
        %v586 = vpop.f32.mrb[0].mxu0
        %v587 = vadd.f32 %v486, %v586
        %v588 = vpop.f32.mrb[0].mxu0
        %v589 = vpop.f32.mrb[0].mxu0
        %v590 = vadd.f32 %v486, %v589
        %v591 = vpop.f32.mrb[0].mxu0
        %592 = vmatprep.mubr.bf16.mxu0 0
        %593 = vmatmul.mubr.bf16.gmra.mrb[0].mxu0 %v461
        %v594 = vpop.f32.mrb[0].mxu0
        %v595 = vadd.f32 %v486, %v594
        %v596 = vpop.f32.mrb[0].mxu0
        %v597 = vpop.f32.mrb[0].mxu0
        %v598 = vadd.f32 %v486, %v597
        %v599 = vpop.f32.mrb[0].mxu0
        %600 = vmatprep.mubr.bf16.mxu0 0
        %601 = vmatmul.mubr.bf16.gmra.mrb[0].mxu0 %v462
        %v602 = vpop.f32.mrb[0].mxu0
        %v603 = vadd.f32 %v486, %v602
        %v604 = vpop.f32.mrb[0].mxu0
        %v605 = vpop.f32.mrb[0].mxu0
        %v606 = vadd.f32 %v486, %v605
        %v607 = vpop.f32.mrb[0].mxu0
        %608 = vmatprep.mubr.bf16.mxu0 0
        %609 = vmatmul.mubr.bf16.gmra.mrb[0].mxu0 %v463
        %v610 = vpop.f32.mrb[0].mxu0
        %v611 = vadd.f32 %v486, %v610
        %v612 = vpop.f32.mrb[0].mxu0
        %v613 = vpop.f32.mrb[0].mxu0
        %v614 = vadd.f32 %v486, %v613
        %v615 = vpop.f32.mrb[0].mxu0
        %616 = vmatprep.mubr.bf16.mxu0 0
        %617 = vmatmul.mubr.bf16.gmra.mrb[0].mxu0 %v464
        %v618 = vpop.f32.mrb[0].mxu0
        %v619 = vadd.f32 %v486, %v618
        %v620 = vpop.f32.mrb[0].mxu0
        %v621 = vpop.f32.mrb[0].mxu0
        %v622 = vpop.f32.mrb[0].mxu0
        %623 = vdwg.mxu0
        %v624 = vmax.f32 %v571, 0.0
        %v625 = vmax.f32 %v574, 0.0
        %v626 = vmax.f32 %v579, 0.0
        %v627 = vmax.f32 %v582, 0.0
        %v628 = vmax.f32 %v587, 0.0
        %v629 = vmax.f32 %v590, 0.0
        %v630 = vmax.f32 %v595, 0.0
        %v631 = vmax.f32 %v598, 0.0
        %v632 = vmax.f32 %v603, 0.0
        %v633 = vmax.f32 %v606, 0.0
        %v634 = vmax.f32 %v611, 0.0
        %v635 = vmax.f32 %v614, 0.0
        %v636 = vmax.f32 %v619, 0.0
        %v637 = vpack.c.bf16 %v625, %v624
        %v638 = vpack.c.bf16 %v627, %v626
        %v639 = vpack.c.bf16 %v629, %v628
        %v640 = vpack.c.bf16 %v631, %v630
        %v641 = vpack.c.bf16 %v633, %v632
        %v642 = vpack.c.bf16 %v635, %v634
        %v643 = vpack.c.bf16 %v636, %v636
        %v644 = vld [vmem:[%s3] sm:$0xf]
        %v645 = vld [vmem:[%s3 + $0x4] sm:$0xf]
        %v646 = vld [vmem:[%s3 + $0x8] sm:$0xf]
        %v647 = vld [vmem:[%s3 + $0xc] sm:$0xf]
        %v648 = vld [vmem:[%s3 + $0x10] sm:$0xf]
        %v649 = vld [vmem:[%s3 + $0x14] sm:$0xf]
        %v650 = vld [vmem:[%s3 + $0x18] sm:$0xf]
        %v651 = vld [vmem:[%s3 + $0x1c] sm:$0xf]
        %v652 = vld [vmem:[%s3 + $0x20] sm:$0xf]
        %v653 = vld [vmem:[%s3 + $0x24] sm:$0xf]
        %v654 = vld [vmem:[%s3 + $0x28] sm:$0xf]
        %v655 = vld [vmem:[%s3 + $0x2c] sm:$0xf]
        %v656 = vld [vmem:[%s3 + $0x30] sm:$0xf]
        %v657 = vld [vmem:[%s3 + $0x34] sm:$0xf]
        %v658 = vld [vmem:[%s3 + $0x38] sm:$0xf]
        %v659 = vld [vmem:[%s3 + $0x3c] sm:$0xf]
        %v660 = vld [vmem:[%s4 + $0x2] sm:$0x1]
        %v662 = vlaneseq
        %v663 = vshrl.u32 %v662, 7
        %v664 = vsub.s32 0, %v663
        %v665 = vrot.slane %v660, %v664
        %v683 = vunpack.c.l.b16 %v644
        %v684 = vunpack.c.l.b16 %v645
        %v685 = vunpack.c.l.b16 %v646
        %v686 = vunpack.c.l.b16 %v647
        %v687 = vunpack.c.l.b16 %v648
        %v688 = vunpack.c.l.b16 %v649
        %v689 = vunpack.c.l.b16 %v650
        %v690 = vunpack.c.l.b16 %v651
        %v691 = vunpack.c.l.b16 %v652
        %v692 = vunpack.c.l.b16 %v653
        %v693 = vunpack.c.l.b16 %v654
        %v694 = vunpack.c.l.b16 %v655
        %v695 = vunpack.c.l.b16 %v656
        %v696 = vunpack.c.l.b16 %v657
        %v697 = vunpack.c.l.b16 %v658
        %v698 = vunpack.c.l.b16 %v659
        %v699 = vpack.c.b16 %v684, %v683
        %v700 = vpack.c.b16 %v686, %v685
        %v701 = vpack.c.b16 %v688, %v687
        %v702 = vpack.c.b16 %v690, %v689
        %v703 = vpack.c.b16 %v692, %v691
        %v704 = vpack.c.b16 %v694, %v693
        %v705 = vpack.c.b16 %v696, %v695
        %v706 = vpack.c.b16 %v698, %v697
        %715 = vmatprep.subr.bf16.mxu0 0
        %716 = vmatpush1.bf16.msra.mxu0 %v699
        %717 = vmatprep.subr.bf16.mxu0 0
        %718 = vmatpush1.bf16.msra.mxu0 %v700
        %719 = vmatprep.subr.bf16.mxu0 0
        %720 = vmatpush1.bf16.msra.mxu0 %v701
        %721 = vmatprep.subr.bf16.mxu0 0
        %722 = vmatpush1.bf16.msra.mxu0 %v702
        %723 = vmatprep.subr.bf16.mxu0 0
        %724 = vmatpush1.bf16.msra.mxu0 %v703
        %725 = vmatprep.subr.bf16.mxu0 0
        %726 = vmatpush1.bf16.msra.mxu0 %v704
        %727 = vmatprep.subr.bf16.mxu0 0
        %728 = vmatpush1.bf16.msra.mxu0 %v705
        %729 = vmatprep.subr.bf16.mxu0 0
        %730 = vmatpush1.bf16.msra.mxu0 %v706
        %731 = vmatprep.subr.bf16.mxu0 0
        %732 = vmatpush1.bf16.msra.mxu0 0
        %733 = vmatprep.subr.bf16.mxu0 0
        %734 = vmatpush1.bf16.msra.mxu0 0
        %735 = vmatprep.subr.bf16.mxu0 0
        %736 = vmatpush1.bf16.msra.mxu0 0
        %737 = vmatprep.subr.bf16.mxu0 0
        %738 = vmatpush1.bf16.msra.mxu0 0
        %739 = vmatprep.subr.bf16.mxu0 0
        %740 = vmatpush1.bf16.msra.mxu0 0
        %741 = vmatprep.subr.bf16.mxu0 0
        %742 = vmatpush1.bf16.msra.mxu0 0
        %743 = vmatprep.subr.bf16.mxu0 0
        %744 = vmatpush1.bf16.msra.mxu0 0
        %745 = vmatprep.subr.bf16.mxu0 0
        %746 = vmatpush1.bf16.msra.mxu0 0
        %747 = vmatprep.mubr.bf16.mxu0 0
        %748 = vmatmul.mubr.bf16.gmra.mrb[0].mxu0 %v637
        %v749 = vpop.f32.mrb[0].mxu0
        %v750 = vadd.f32 %v665, %v749
        %v751 = vpop.f32.mrb[0].mxu0
        %v752 = vpop.f32.mrb[0].mxu0
        %v753 = vadd.f32 %v665, %v752
        %v754 = vpop.f32.mrb[0].mxu0
        %755 = vmatprep.mubr.bf16.mxu0 0
        %756 = vmatmul.mubr.bf16.gmra.mrb[0].mxu0 %v638
        %v757 = vpop.f32.mrb[0].mxu0
        %v758 = vadd.f32 %v665, %v757
        %v759 = vpop.f32.mrb[0].mxu0
        %v760 = vpop.f32.mrb[0].mxu0
        %v761 = vadd.f32 %v665, %v760
        %v762 = vpop.f32.mrb[0].mxu0
        %763 = vmatprep.mubr.bf16.mxu0 0
        %764 = vmatmul.mubr.bf16.gmra.mrb[0].mxu0 %v639
        %v765 = vpop.f32.mrb[0].mxu0
        %v766 = vadd.f32 %v665, %v765
        %v767 = vpop.f32.mrb[0].mxu0
        %v768 = vpop.f32.mrb[0].mxu0
        %v769 = vadd.f32 %v665, %v768
        %v770 = vpop.f32.mrb[0].mxu0
        %771 = vmatprep.mubr.bf16.mxu0 0
        %772 = vmatmul.mubr.bf16.gmra.mrb[0].mxu0 %v640
        %v773 = vpop.f32.mrb[0].mxu0
        %v774 = vadd.f32 %v665, %v773
        %v775 = vpop.f32.mrb[0].mxu0
        %v776 = vpop.f32.mrb[0].mxu0
        %v777 = vadd.f32 %v665, %v776
        %v778 = vpop.f32.mrb[0].mxu0
        %779 = vmatprep.mubr.bf16.mxu0 0
        %780 = vmatmul.mubr.bf16.gmra.mrb[0].mxu0 %v641
        %v781 = vpop.f32.mrb[0].mxu0
        %v782 = vadd.f32 %v665, %v781
        %v783 = vpop.f32.mrb[0].mxu0
        %v784 = vpop.f32.mrb[0].mxu0
        %v785 = vadd.f32 %v665, %v784
        %v786 = vpop.f32.mrb[0].mxu0
        %787 = vmatprep.mubr.bf16.mxu0 0
        %788 = vmatmul.mubr.bf16.gmra.mrb[0].mxu0 %v642
        %v789 = vpop.f32.mrb[0].mxu0
        %v790 = vadd.f32 %v665, %v789
        %v791 = vpop.f32.mrb[0].mxu0
        %v792 = vpop.f32.mrb[0].mxu0
        %v793 = vadd.f32 %v665, %v792
        %v794 = vpop.f32.mrb[0].mxu0
        %795 = vmatprep.mubr.bf16.mxu0 0
        %796 = vmatmul.mubr.bf16.gmra.mrb[0].mxu0 %v643
        %v797 = vpop.f32.mrb[0].mxu0
        %v798 = vadd.f32 %v665, %v797
        %v799 = vpop.f32.mrb[0].mxu0
        %v800 = vpop.f32.mrb[0].mxu0
        %v801 = vpop.f32.mrb[0].mxu0
        %802 = vdwg.mxu0
        %803 = vst [vmem:[%s245] sm:$0xff] %v750
        %804 = vst [vmem:[%s245 + $0x8] sm:$0xff] %v753
        %805 = vst [vmem:[%s245 + $0x10] sm:$0xff] %v758
        %806 = vst [vmem:[%s245 + $0x18] sm:$0xff] %v761
        %807 = vst [vmem:[%s245 + $0x20] sm:$0xff] %v766
        %808 = vst [vmem:[%s245 + $0x28] sm:$0xff] %v769
        %809 = vst [vmem:[%s245 + $0x30] sm:$0xff] %v774
        %810 = vst [vmem:[%s245 + $0x38] sm:$0xff] %v777
        %811 = vst [vmem:[%s245 + $0x40] sm:$0xff] %v782
        %812 = vst [vmem:[%s245 + $0x48] sm:$0xff] %v785
        %813 = vst [vmem:[%s245 + $0x50] sm:$0xff] %v790
        %814 = vst [vmem:[%s245 + $0x58] sm:$0xff] %v793
        %815 = vst [vmem:[%s245 + $0x60] sm:$0xff] %v798
        %s816 = sand.u32 %s138, 1
        %s817 = scalar_lea.sflag [#allocation4], %s816
        %s818 = sand.u32 %s138, 1
        %s819 = smul.addr %s818, 104
        %s820 = scalar_lea.vmem [#allocation5], %s819
        // Predicated region
        $region45: #{tpu_custom_call.1} parent=39 // pred_check
          %p821 = pneg %p148
        $region46: #{tpu_custom_call.1} parent=39 // pred_check_branch
          %823 = sbr.rel (%p821) target = $region48
        $region47: #{tpu_custom_call.1} parent=39 // pred_region
          %s824 = smul.u32 13, %s20
          %s825 = ssub.s32 25, %s824
          %p826 = scmp.lt.s32.totalorder %s825, 13
          %s827 = scalar_select %p826, %s825, 13
          %s828 = smul.u32 128, %s827
          %s830 = ssub.s32 1664, %s828
          %831 = vsyncadd %s817, %s830
          %p832 = scmp.ne.s32.totalorder 0, %s828
          %s833 = smul.addr %s824, 128
          %s834 = scalar_lea.hbm %s5, %s833
          %s835 = smul.u32 8, %s827
          %s836 = sshll.u32 %s820, 4
          %s837 = int_to_ptr.vmem [resolvable:$true] %s836
          %s838 = sshll.u32 %s835, 4
          %842 = dma.vmem_to_hbm [thread:$0]  (%p832), %s837, %s838, %s834, %s817, 128, 128, 8
        $region48: #{tpu_custom_call.1} parent=39 // pred_fallthru
          _
      $region40: #{tpu_custom_call.1} parent=5 // pred_fallthru
        _
      %p843 = scmp.le.s32.totalorder 2, %s15
      // Predicated region
      $region49: #{tpu_custom_call.1} parent=5 // pred_check
        %p844 = pneg %p843
      $region50: #{tpu_custom_call.1} parent=5 // pred_check_branch
        %846 = sbr.rel (%p844) target = $region52
      $region51: #{tpu_custom_call.1} parent=5 // pred_region
        %s847 = ssub.s32 %s15, 2
        // Predicated region
        $region53: #{tpu_custom_call.1} parent=51 // pred_check
          %p848 = pneg %p154
        $region54: #{tpu_custom_call.1} parent=51 // pred_check_branch
          %850 = sbr.rel (%p848) target = $region56
        $region55: #{tpu_custom_call.1} parent=51 // pred_region
          %s851 = sand.u32 %s139, 1
          %s852 = scalar_lea.sflag [#allocation4], %s851
          %s853 = sand.u32 %s139, 1
          %s854 = smul.addr %s853, 104
          %s855 = scalar_lea.vmem [#allocation5], %s854
          %856 = dma.done %s852, 1664
        $region56: #{tpu_custom_call.1} parent=51 // pred_fallthru
          _
      $region52: #{tpu_custom_call.1} parent=5 // pred_fallthru
        _
    $region6: #{tpu_custom_call.1} parent=1 // loop_footer
      %s19 = sadd.s32 1, %s15
    $region7: #{tpu_custom_call.1} parent=1 // loop_footer_branch
      %14 = sbr.rel target = $region3
    $region8: #{tpu_custom_call.1} parent=1 // loop_exit
      _
    %857 = vsyncpa [#allocation3], 1
    %s858 = scalar_lea.sflag [#allocation3], 1
    %859 = vsyncpa %s858, 1
    %860 = vsyncpa [#allocation4], 1
    %s861 = scalar_lea.sflag [#allocation4], 1
    %862 = vsyncpa %s861, 1

</llo_original>
